<compile_context>
chip_gen: v7x
topology: tpu7x:2x2x1
jax: 0.10.0
libtpu: 0.0.40
codegen_flags: <defaults>
</compile_context>

<pallas_src>
import jax
import jax.numpy as jnp
from jax.experimental import pallas as pl
from jax.experimental.pallas import tpu as pltpu


def _round_up(n, m):
    return ((n + m - 1) // m) * m


def mlp_kernel(x_ref, wc_ref, w2t_ref, o_ref):
    # x_ref : (1, T)   lane-major batch tile
    # wc_ref: (16, 8)  packed column params:
    #         col0 = w1 (16,), col1 = b1 (16,), col2[:8] = b2, col3[:8] = w3, col4[0] = b3
    # w2t_ref: (8, 16) == W2^T (out_features, in_features)
    x = x_ref[...]                                    # (1, T)

    w1_col = wc_ref[:, 0:1]                           # (16, 1)
    b1_col = wc_ref[:, 1:2]                           # (16, 1)
    b2_col = wc_ref[0:8, 2:3]                         # (8, 1)
    w3_col = wc_ref[0:8, 3:4]                         # (8, 1)
    b3 = wc_ref[0:1, 4:5]                             # (1, 1)

    # Layer 1: Linear(1,16) + tanh. K=1 contraction -> pure VPU broadcast, no MXU.
    h1 = jnp.tanh(w1_col * x + b1_col)                # (16, T)

    # Layer 2: Linear(16,8) + tanh as 16 unrolled broadcast FMAs on the VPU.
    acc = w2t_ref[:, 0:1] * h1[0:1, :]                # (8, T)
    for k in range(1, 16):
        acc = acc + w2t_ref[:, k:k + 1] * h1[k:k + 1, :]
    h2 = jnp.tanh(acc + b2_col)                       # (8, T)

    # Layer 3: Linear(8,1) as multiply + 8-sublane reduction (XLU), lane-dense output.
    o_ref[...] = jnp.sum(w3_col * h2, axis=0, keepdims=True) + b3   # (1, T)


def my_module2_forward(x, params, *, max_tile=2048):
    """x: (N, 1) float32. params: dict of w1,b1,w2,b2,w3,b3 (PyTorch-equivalent init)."""
    n = x.shape[0]
    # Lane tile: multiple of 128, capped so large batches get a pipelined grid.
    t = min(max_tile, _round_up(n, 128))
    n_pad = _round_up(n, t)

    # Transposed, lane-dense, zero-padded input done once in the wrapper.
    xt = jnp.zeros((1, n_pad), jnp.float32).at[0, :n].set(x[:, 0].astype(jnp.float32))

    # Pack the tiny parameter set into two small resident tensors (fewer DMAs,
    # directly usable orientations inside the kernel).
    wc = jnp.zeros((16, 8), jnp.float32)
    wc = wc.at[:, 0].set(params["w1"][0, :])          # w1: (1,16) -> column
    wc = wc.at[:, 1].set(params["b1"][0, :])          # b1: (1,16) -> column
    wc = wc.at[:8, 2].set(params["b2"][0, :])         # b2: (1,8)  -> column
    wc = wc.at[:8, 3].set(params["w3"][:, 0])         # w3: (8,1)  -> column
    wc = wc.at[0, 4].set(params["b3"][0, 0])          # b3 scalar
    w2t = params["w2"].T                              # (8, 16)

    grid = (n_pad // t,)
    out_t = pl.pallas_call(
        mlp_kernel,
        out_shape=jax.ShapeDtypeStruct((1, n_pad), jnp.float32),
        grid=grid,
        in_specs=[
            pl.BlockSpec((1, t), lambda i: (0, i)),    # batch tile, pipelined
            pl.BlockSpec((16, 8), lambda i: (0, 0)),   # packed params, resident
            pl.BlockSpec((8, 16), lambda i: (0, 0)),   # W2^T, resident
        ],
        out_specs=pl.BlockSpec((1, t), lambda i: (0, i)),
        compiler_params=pltpu.CompilerParams(
            dimension_semantics=("parallel",),         # v7x: shard batch across 2 TCs
        ),
    )(xt, wc, w2t)

    return out_t[0, :n].reshape(n, 1)


def init_params(key):
    """Deterministic init mimicking nn.Linear default (uniform +-1/sqrt(fan_in))."""
    ks = jax.random.split(key, 6)

    def lin(kw, kb, fan_in, fan_out):
        bound = 1.0 / (fan_in ** 0.5)
        w = jax.random.uniform(kw, (fan_in, fan_out), jnp.float32, -bound, bound)
        b = jax.random.uniform(kb, (1, fan_out), jnp.float32, -bound, bound)
        return w, b

    w1, b1 = lin(ks[0], ks[1], 1, 16)
    w2, b2 = lin(ks[2], ks[3], 16, 8)
    w3, b3 = lin(ks[4], ks[5], 8, 1)
    return {"w1": w1, "b1": b1, "w2": w2, "b2": b2, "w3": w3, "b3": b3}


def reference_forward(x, p):
    h1 = jnp.tanh(x @ p["w1"] + p["b1"])
    h2 = jnp.tanh(h1 @ p["w2"] + p["b2"])
    return h2 @ p["w3"] + p["b3"]


if __name__ == "__main__":
    key = jax.random.PRNGKey(0)
    params = init_params(key)

    # Same input as the original script: column vector 1..13, shape (13, 1).
    x = jnp.arange(1.0, 14.0, dtype=jnp.float32).reshape(13, 1)
    out = jax.block_until_ready(my_module2_forward(x, params))
    ref = reference_forward(x, params)
    assert out.shape == (13, 1)
    assert jnp.allclose(out, ref, atol=1e-4, rtol=1e-4), "mismatch vs reference (N=13)"

    # Larger batch to exercise the multi-tile pipelined grid path.
    x_big = jax.random.normal(jax.random.PRNGKey(1), (5000, 1), jnp.float32) * 5.0
    out_big = jax.block_until_ready(my_module2_forward(x_big, params))
    ref_big = reference_forward(x_big, params)
    assert out_big.shape == (5000, 1)
    assert jnp.allclose(out_big, ref_big, atol=1e-4, rtol=1e-4), "mismatch vs reference (N=5000)"

    print("KERNEL_OK")
</pallas_src>

<mosaic_0001>
module attributes {stable_mosaic.version = 11 : i64} {
  func.func @mlp_kernel(%arg0: i32, %arg1: memref<1x128xf32, #tpu.memory_space<vmem>>, %arg2: memref<16x8xf32, #tpu.memory_space<vmem>>, %arg3: memref<8x16xf32, #tpu.memory_space<vmem>>, %arg4: memref<1x128xf32, #tpu.memory_space<vmem>>) attributes {dimension_semantics = [#tpu.dimension_semantics<parallel>], iteration_bounds = array<i64: 1>, scalar_prefetch = 0 : i64, scratch_operands = 0 : i64, tpu.core_type = #tpu.core_type<tc>, window_params = [{transform_indices = @transform_0, window_bounds = array<i64: 1, 128>}, {pipeline_mode = #tpu.pipeline_mode<synchronous>, transform_indices = @transform_1, window_bounds = array<i64: 16, 8>}, {pipeline_mode = #tpu.pipeline_mode<synchronous>, transform_indices = @transform_2, window_bounds = array<i64: 8, 16>}, {transform_indices = @transform_3, window_bounds = array<i64: 1, 128>}]} {
    %c0 = arith.constant 0 : index
    %c0_0 = arith.constant 0 : index
    %0 = vector.load %arg1[%c0, %c0_0] : memref<1x128xf32, #tpu.memory_space<vmem>>, vector<1x128xf32>
    %c0_1 = arith.constant 0 : index
    %c0_2 = arith.constant 0 : index
    %1 = vector.load %arg2[%c0_1, %c0_2] : memref<16x8xf32, #tpu.memory_space<vmem>>, vector<16x1xf32>
    %c0_3 = arith.constant 0 : index
    %c1 = arith.constant 1 : index
    %2 = vector.load %arg2[%c0_3, %c1] : memref<16x8xf32, #tpu.memory_space<vmem>>, vector<16x1xf32>
    %c0_4 = arith.constant 0 : index
    %c2 = arith.constant 2 : index
    %3 = vector.load %arg2[%c0_4, %c2] : memref<16x8xf32, #tpu.memory_space<vmem>>, vector<8x1xf32>
    %c0_5 = arith.constant 0 : index
    %c3 = arith.constant 3 : index
    %4 = vector.load %arg2[%c0_5, %c3] : memref<16x8xf32, #tpu.memory_space<vmem>>, vector<8x1xf32>
    %c0_6 = arith.constant 0 : index
    %c4 = arith.constant 4 : index
    %5 = vector.load %arg2[%c0_6, %c4] : memref<16x8xf32, #tpu.memory_space<vmem>>, vector<1x1xf32>
    %6 = vector.broadcast %1 : vector<16x1xf32> to vector<16x128xf32>
    %7 = vector.broadcast %0 : vector<1x128xf32> to vector<16x128xf32>
    %8 = arith.mulf %6, %7 : vector<16x128xf32>
    %9 = vector.broadcast %2 : vector<16x1xf32> to vector<16x128xf32>
    %10 = arith.addf %8, %9 : vector<16x128xf32>
    %11 = math.tanh %10 : vector<16x128xf32>
    %c0_7 = arith.constant 0 : index
    %c0_8 = arith.constant 0 : index
    %12 = vector.load %arg3[%c0_7, %c0_8] : memref<8x16xf32, #tpu.memory_space<vmem>>, vector<8x1xf32>
    %13 = vector.extract_strided_slice %11 {offsets = [0, 0], sizes = [1, 128], strides = [1, 1]} : vector<16x128xf32> to vector<1x128xf32>
    %14 = vector.broadcast %12 : vector<8x1xf32> to vector<8x128xf32>
    %15 = vector.broadcast %13 : vector<1x128xf32> to vector<8x128xf32>
    %16 = arith.mulf %14, %15 : vector<8x128xf32>
    %c0_9 = arith.constant 0 : index
    %c1_10 = arith.constant 1 : index
    %17 = vector.load %arg3[%c0_9, %c1_10] : memref<8x16xf32, #tpu.memory_space<vmem>>, vector<8x1xf32>
    %18 = vector.extract_strided_slice %11 {offsets = [1, 0], sizes = [1, 128], strides = [1, 1]} : vector<16x128xf32> to vector<1x128xf32>
    %19 = vector.broadcast %17 : vector<8x1xf32> to vector<8x128xf32>
    %20 = vector.broadcast %18 : vector<1x128xf32> to vector<8x128xf32>
    %21 = arith.mulf %19, %20 : vector<8x128xf32>
    %22 = arith.addf %16, %21 : vector<8x128xf32>
    %c0_11 = arith.constant 0 : index
    %c2_12 = arith.constant 2 : index
    %23 = vector.load %arg3[%c0_11, %c2_12] : memref<8x16xf32, #tpu.memory_space<vmem>>, vector<8x1xf32>
    %24 = vector.extract_strided_slice %11 {offsets = [2, 0], sizes = [1, 128], strides = [1, 1]} : vector<16x128xf32> to vector<1x128xf32>
    %25 = vector.broadcast %23 : vector<8x1xf32> to vector<8x128xf32>
    %26 = vector.broadcast %24 : vector<1x128xf32> to vector<8x128xf32>
    %27 = arith.mulf %25, %26 : vector<8x128xf32>
    %28 = arith.addf %22, %27 : vector<8x128xf32>
    %c0_13 = arith.constant 0 : index
    %c3_14 = arith.constant 3 : index
    %29 = vector.load %arg3[%c0_13, %c3_14] : memref<8x16xf32, #tpu.memory_space<vmem>>, vector<8x1xf32>
    %30 = vector.extract_strided_slice %11 {offsets = [3, 0], sizes = [1, 128], strides = [1, 1]} : vector<16x128xf32> to vector<1x128xf32>
    %31 = vector.broadcast %29 : vector<8x1xf32> to vector<8x128xf32>
    %32 = vector.broadcast %30 : vector<1x128xf32> to vector<8x128xf32>
    %33 = arith.mulf %31, %32 : vector<8x128xf32>
    %34 = arith.addf %28, %33 : vector<8x128xf32>
    %c0_15 = arith.constant 0 : index
    %c4_16 = arith.constant 4 : index
    %35 = vector.load %arg3[%c0_15, %c4_16] : memref<8x16xf32, #tpu.memory_space<vmem>>, vector<8x1xf32>
    %36 = vector.extract_strided_slice %11 {offsets = [4, 0], sizes = [1, 128], strides = [1, 1]} : vector<16x128xf32> to vector<1x128xf32>
    %37 = vector.broadcast %35 : vector<8x1xf32> to vector<8x128xf32>
    %38 = vector.broadcast %36 : vector<1x128xf32> to vector<8x128xf32>
    %39 = arith.mulf %37, %38 : vector<8x128xf32>
    %40 = arith.addf %34, %39 : vector<8x128xf32>
    %c0_17 = arith.constant 0 : index
    %c5 = arith.constant 5 : index
    %41 = vector.load %arg3[%c0_17, %c5] : memref<8x16xf32, #tpu.memory_space<vmem>>, vector<8x1xf32>
    %42 = vector.extract_strided_slice %11 {offsets = [5, 0], sizes = [1, 128], strides = [1, 1]} : vector<16x128xf32> to vector<1x128xf32>
    %43 = vector.broadcast %41 : vector<8x1xf32> to vector<8x128xf32>
    %44 = vector.broadcast %42 : vector<1x128xf32> to vector<8x128xf32>
    %45 = arith.mulf %43, %44 : vector<8x128xf32>
    %46 = arith.addf %40, %45 : vector<8x128xf32>
    %c0_18 = arith.constant 0 : index
    %c6 = arith.constant 6 : index
    %47 = vector.load %arg3[%c0_18, %c6] : memref<8x16xf32, #tpu.memory_space<vmem>>, vector<8x1xf32>
    %48 = vector.extract_strided_slice %11 {offsets = [6, 0], sizes = [1, 128], strides = [1, 1]} : vector<16x128xf32> to vector<1x128xf32>
    %49 = vector.broadcast %47 : vector<8x1xf32> to vector<8x128xf32>
    %50 = vector.broadcast %48 : vector<1x128xf32> to vector<8x128xf32>
    %51 = arith.mulf %49, %50 : vector<8x128xf32>
    %52 = arith.addf %46, %51 : vector<8x128xf32>
    %c0_19 = arith.constant 0 : index
    %c7 = arith.constant 7 : index
    %53 = vector.load %arg3[%c0_19, %c7] : memref<8x16xf32, #tpu.memory_space<vmem>>, vector<8x1xf32>
    %54 = vector.extract_strided_slice %11 {offsets = [7, 0], sizes = [1, 128], strides = [1, 1]} : vector<16x128xf32> to vector<1x128xf32>
    %55 = vector.broadcast %53 : vector<8x1xf32> to vector<8x128xf32>
    %56 = vector.broadcast %54 : vector<1x128xf32> to vector<8x128xf32>
    %57 = arith.mulf %55, %56 : vector<8x128xf32>
    %58 = arith.addf %52, %57 : vector<8x128xf32>
    %c0_20 = arith.constant 0 : index
    %c8 = arith.constant 8 : index
    %59 = vector.load %arg3[%c0_20, %c8] : memref<8x16xf32, #tpu.memory_space<vmem>>, vector<8x1xf32>
    %60 = vector.extract_strided_slice %11 {offsets = [8, 0], sizes = [1, 128], strides = [1, 1]} : vector<16x128xf32> to vector<1x128xf32>
    %61 = vector.broadcast %59 : vector<8x1xf32> to vector<8x128xf32>
    %62 = vector.broadcast %60 : vector<1x128xf32> to vector<8x128xf32>
    %63 = arith.mulf %61, %62 : vector<8x128xf32>
    %64 = arith.addf %58, %63 : vector<8x128xf32>
    %c0_21 = arith.constant 0 : index
    %c9 = arith.constant 9 : index
    %65 = vector.load %arg3[%c0_21, %c9] : memref<8x16xf32, #tpu.memory_space<vmem>>, vector<8x1xf32>
    %66 = vector.extract_strided_slice %11 {offsets = [9, 0], sizes = [1, 128], strides = [1, 1]} : vector<16x128xf32> to vector<1x128xf32>
    %67 = vector.broadcast %65 : vector<8x1xf32> to vector<8x128xf32>
    %68 = vector.broadcast %66 : vector<1x128xf32> to vector<8x128xf32>
    %69 = arith.mulf %67, %68 : vector<8x128xf32>
    %70 = arith.addf %64, %69 : vector<8x128xf32>
    %c0_22 = arith.constant 0 : index
    %c10 = arith.constant 10 : index
    %71 = vector.load %arg3[%c0_22, %c10] : memref<8x16xf32, #tpu.memory_space<vmem>>, vector<8x1xf32>
    %72 = vector.extract_strided_slice %11 {offsets = [10, 0], sizes = [1, 128], strides = [1, 1]} : vector<16x128xf32> to vector<1x128xf32>
    %73 = vector.broadcast %71 : vector<8x1xf32> to vector<8x128xf32>
    %74 = vector.broadcast %72 : vector<1x128xf32> to vector<8x128xf32>
    %75 = arith.mulf %73, %74 : vector<8x128xf32>
    %76 = arith.addf %70, %75 : vector<8x128xf32>
    %c0_23 = arith.constant 0 : index
    %c11 = arith.constant 11 : index
    %77 = vector.load %arg3[%c0_23, %c11] : memref<8x16xf32, #tpu.memory_space<vmem>>, vector<8x1xf32>
    %78 = vector.extract_strided_slice %11 {offsets = [11, 0], sizes = [1, 128], strides = [1, 1]} : vector<16x128xf32> to vector<1x128xf32>
    %79 = vector.broadcast %77 : vector<8x1xf32> to vector<8x128xf32>
    %80 = vector.broadcast %78 : vector<1x128xf32> to vector<8x128xf32>
    %81 = arith.mulf %79, %80 : vector<8x128xf32>
    %82 = arith.addf %76, %81 : vector<8x128xf32>
    %c0_24 = arith.constant 0 : index
    %c12 = arith.constant 12 : index
    %83 = vector.load %arg3[%c0_24, %c12] : memref<8x16xf32, #tpu.memory_space<vmem>>, vector<8x1xf32>
    %84 = vector.extract_strided_slice %11 {offsets = [12, 0], sizes = [1, 128], strides = [1, 1]} : vector<16x128xf32> to vector<1x128xf32>
    %85 = vector.broadcast %83 : vector<8x1xf32> to vector<8x128xf32>
    %86 = vector.broadcast %84 : vector<1x128xf32> to vector<8x128xf32>
    %87 = arith.mulf %85, %86 : vector<8x128xf32>
    %88 = arith.addf %82, %87 : vector<8x128xf32>
    %c0_25 = arith.constant 0 : index
    %c13 = arith.constant 13 : index
    %89 = vector.load %arg3[%c0_25, %c13] : memref<8x16xf32, #tpu.memory_space<vmem>>, vector<8x1xf32>
    %90 = vector.extract_strided_slice %11 {offsets = [13, 0], sizes = [1, 128], strides = [1, 1]} : vector<16x128xf32> to vector<1x128xf32>
    %91 = vector.broadcast %89 : vector<8x1xf32> to vector<8x128xf32>
    %92 = vector.broadcast %90 : vector<1x128xf32> to vector<8x128xf32>
    %93 = arith.mulf %91, %92 : vector<8x128xf32>
    %94 = arith.addf %88, %93 : vector<8x128xf32>
    %c0_26 = arith.constant 0 : index
    %c14 = arith.constant 14 : index
    %95 = vector.load %arg3[%c0_26, %c14] : memref<8x16xf32, #tpu.memory_space<vmem>>, vector<8x1xf32>
    %96 = vector.extract_strided_slice %11 {offsets = [14, 0], sizes = [1, 128], strides = [1, 1]} : vector<16x128xf32> to vector<1x128xf32>
    %97 = vector.broadcast %95 : vector<8x1xf32> to vector<8x128xf32>
    %98 = vector.broadcast %96 : vector<1x128xf32> to vector<8x128xf32>
    %99 = arith.mulf %97, %98 : vector<8x128xf32>
    %100 = arith.addf %94, %99 : vector<8x128xf32>
    %c0_27 = arith.constant 0 : index
    %c15 = arith.constant 15 : index
    %101 = vector.load %arg3[%c0_27, %c15] : memref<8x16xf32, #tpu.memory_space<vmem>>, vector<8x1xf32>
    %102 = vector.extract_strided_slice %11 {offsets = [15, 0], sizes = [1, 128], strides = [1, 1]} : vector<16x128xf32> to vector<1x128xf32>
    %103 = vector.broadcast %101 : vector<8x1xf32> to vector<8x128xf32>
    %104 = vector.broadcast %102 : vector<1x128xf32> to vector<8x128xf32>
    %105 = arith.mulf %103, %104 : vector<8x128xf32>
    %106 = arith.addf %100, %105 : vector<8x128xf32>
    %107 = vector.broadcast %3 : vector<8x1xf32> to vector<8x128xf32>
    %108 = arith.addf %106, %107 : vector<8x128xf32>
    %109 = math.tanh %108 : vector<8x128xf32>
    %110 = vector.broadcast %4 : vector<8x1xf32> to vector<8x128xf32>
    %111 = arith.mulf %110, %109 : vector<8x128xf32>
    %cst = arith.constant dense<0.000000e+00> : vector<128xf32>
    %112 = vector.multi_reduction <add>, %111, %cst [0] : vector<8x128xf32> to vector<128xf32>
    %113 = vector.shape_cast %112 : vector<128xf32> to vector<1x128xf32>
    %114 = vector.broadcast %5 : vector<1x1xf32> to vector<1x128xf32>
    %115 = arith.addf %113, %114 : vector<1x128xf32>
    %c0_28 = arith.constant 0 : index
    %c0_29 = arith.constant 0 : index
    %116 = vector.load %arg4[%c0_28, %c0_29] : memref<1x128xf32, #tpu.memory_space<vmem>>, vector<1x128xf32>
    tpu.vector_store %arg4[%c0_28, %c0_29], %115 {strides = array<i32>} : memref<1x128xf32, #tpu.memory_space<vmem>>, vector<1x128xf32>,
    return
  }
  func.func @transform_0(%arg0: i32) -> (i32, i32) {
    %c0_i32 = arith.constant 0 : i32
    %c0_i32_0 = arith.constant 0 : i32
    return %c0_i32, %arg0 : i32, i32
  }
  func.func @transform_1(%arg0: i32) -> (i32, i32) {
    %c0_i32 = arith.constant 0 : i32
    %c0_i32_0 = arith.constant 0 : i32
    %c0_i32_1 = arith.constant 0 : i32
    return %c0_i32, %c0_i32_0 : i32, i32
  }
  func.func @transform_2(%arg0: i32) -> (i32, i32) {
    %c0_i32 = arith.constant 0 : i32
    %c0_i32_0 = arith.constant 0 : i32
    %c0_i32_1 = arith.constant 0 : i32
    return %c0_i32, %c0_i32_0 : i32, i32
  }
  func.func @transform_3(%arg0: i32) -> (i32, i32) {
    %c0_i32 = arith.constant 0 : i32
    %c0_i32_0 = arith.constant 0 : i32
    return %c0_i32, %arg0 : i32, i32
  }
}

</mosaic_0001>

<llo_original>
// kernel: tpu_custom_call.1
$region0: #{tpu_custom_call.1}
  #allocation0 [shape = 'u32[]', space=smem, size = 0x4, offset = 0x4, fixed_abs, tag = 'smem constant byte address 0x4 - core index']
  #allocation1 [shape = 'u32[144,128]{1,0:T(1,128)}', space=vmem, size = 0x12000, scoped, tag = 'internal scratch']
  %s0 = inlined_call_operand.vmem [shape: f32[1,128], index: 0, kind: input, shape index: {}]
  %s1 = inlined_call_operand.vmem [shape: f32[16,8], index: 1, kind: input, shape index: {}]
  %s2 = inlined_call_operand.vmem [shape: f32[8,16], index: 2, kind: input, shape index: {}]
  %s3 = inlined_call_operand.hbm [shape: f32[1,128], index: 3, kind: output, shape index: {}]
  %s4 = sld [smem:[#allocation0]]
  $region22: #{tpu_custom_call.1} parent=0
    _
  %s6 = ssub.s32 1, %s4
  %s7 = scalar_select 0, %s6, %s4
  $region1: #{tpu_custom_call.1} parent=0
    #allocation2 [shape = 'u8[512]{0}', space=vmem, size = 0x400, scoped, tag = 'output window, operand 0, single buffered']
    #allocation3 [shape = 's32[1]{0}', space=sflag, size = 0x4, scoped, tag = 'scoped memory for tpu_custom_call.1']
    %8 = vsyncpa [#allocation3], 0
    // Predicated region
    $region2: #{tpu_custom_call.1} parent=1 // pred_check
      _
    $region3: #{tpu_custom_call.1} parent=1 // pred_check_branch
      %10 = sbr.rel (0) target = $region5
    $region4: #{tpu_custom_call.1} parent=1 // pred_region
      _
    $region5: #{tpu_custom_call.1} parent=1 // pred_fallthru
      _
    // Predicated region
    $region6: #{tpu_custom_call.1} parent=1 // pred_check
      _
    $region7: #{tpu_custom_call.1} parent=1 // pred_check_branch
      %12 = sbr.rel (0) target = $region9
    $region8: #{tpu_custom_call.1} parent=1 // pred_region
      _
    $region9: #{tpu_custom_call.1} parent=1 // pred_fallthru
      _
    // Predicated region
    $region10: #{tpu_custom_call.1} parent=1 // pred_check
      _
    $region11: #{tpu_custom_call.1} parent=1 // pred_check_branch
      %14 = sbr.rel (0) target = $region13
    $region12: #{tpu_custom_call.1} parent=1 // pred_region
      _
    $region13: #{tpu_custom_call.1} parent=1 // pred_fallthru
      _
    %v15 = vld [vmem:[%s0] sm:$0x1]
    %v16 = vld [vmem:[%s1] sm:$0xff]
    %v17 = vld [vmem:[%s1 + $0x8] sm:$0xff]
    %v18 = vld [vmem:[%s1] sm:$0x1]
    %20 = vset.pattern.permute.xlu0 0
    %21 = vperm.xlu0 %20, %v16
    %v22 = vpop.permute.xlu0 %21
    %25 = vset.pattern.permute.xlu0 0
    %26 = vperm.xlu0 %25, %v17
    %v27 = vpop.permute.xlu0 %26
    %v30 = vlaneseq
    %v31 = vshrl.u32 %v30, 7
    %v32 = vsub.s32 0, %v31
    %v33 = vrot.slane %v15, %v32
    %v35 = vmul.f32 %v22, %v33
    %v36 = vmul.f32 %v27, %v33
    %37 = vset.pattern.permute.xlu0 1
    %38 = vperm.xlu0 %37, %v16
    %v39 = vpop.permute.xlu0 %38
    %41 = vset.pattern.permute.xlu0 1
    %42 = vperm.xlu0 %41, %v17
    %v43 = vpop.permute.xlu0 %42
    %v45 = vadd.f32 %v35, %v39
    %v46 = vadd.f32 %v36, %v43
    %v47 = vtanh.pop %v45
    %v48 = vtanh.pop %v46
    %v49 = vld [vmem:[%s2] sm:$0xff]
    %51 = vset.pattern.permute.xlu0 0
    %52 = vperm.xlu0 %51, %v49
    %v53 = vpop.permute.xlu0 %52
    %v55 = vlaneseq
    %v56 = vshrl.u32 %v55, 7
    %v57 = vsub.s32 0, %v56
    %v58 = vrot.slane %v47, %v57
    %v59 = vmul.f32 %v53, %v58
    %60 = vset.pattern.permute.xlu0 1
    %61 = vperm.xlu0 %60, %v49
    %v62 = vpop.permute.xlu0 %61
    %v64 = vlaneseq
    %v65 = vshrl.u32 %v64, 7
    %v66 = vsub.s32 1, %v65
    %v67 = vrot.slane %v47, %v66
    %v68 = vmul.f32 %v62, %v67
    %v69 = vadd.f32 %v59, %v68
    %70 = vset.pattern.permute.xlu0 2
    %71 = vperm.xlu0 %70, %v49
    %v72 = vpop.permute.xlu0 %71
    %v74 = vlaneseq
    %v75 = vshrl.u32 %v74, 7
    %v76 = vsub.s32 2, %v75
    %v77 = vrot.slane %v47, %v76
    %v78 = vmul.f32 %v72, %v77
    %v79 = vadd.f32 %v69, %v78
    %80 = vset.pattern.permute.xlu0 3
    %81 = vperm.xlu0 %80, %v49
    %v82 = vpop.permute.xlu0 %81
    %v84 = vlaneseq
    %v85 = vshrl.u32 %v84, 7
    %v86 = vsub.s32 3, %v85
    %v87 = vrot.slane %v47, %v86
    %v88 = vmul.f32 %v82, %v87
    %v89 = vadd.f32 %v79, %v88
    %90 = vset.pattern.permute.xlu0 4
    %91 = vperm.xlu0 %90, %v49
    %v92 = vpop.permute.xlu0 %91
    %v94 = vlaneseq
    %v95 = vshrl.u32 %v94, 7
    %v96 = vsub.s32 4, %v95
    %v97 = vrot.slane %v47, %v96
    %v98 = vmul.f32 %v92, %v97
    %v99 = vadd.f32 %v89, %v98
    %100 = vset.pattern.permute.xlu0 5
    %101 = vperm.xlu0 %100, %v49
    %v102 = vpop.permute.xlu0 %101
    %v104 = vlaneseq
    %v105 = vshrl.u32 %v104, 7
    %v106 = vsub.s32 5, %v105
    %v107 = vrot.slane %v47, %v106
    %v108 = vmul.f32 %v102, %v107
    %v109 = vadd.f32 %v99, %v108
    %110 = vset.pattern.permute.xlu0 6
    %111 = vperm.xlu0 %110, %v49
    %v112 = vpop.permute.xlu0 %111
    %v114 = vlaneseq
    %v115 = vshrl.u32 %v114, 7
    %v116 = vsub.s32 6, %v115
    %v117 = vrot.slane %v47, %v116
    %v118 = vmul.f32 %v112, %v117
    %v119 = vadd.f32 %v109, %v118
    %120 = vset.pattern.permute.xlu0 7
    %121 = vperm.xlu0 %120, %v49
    %v122 = vpop.permute.xlu0 %121
    %v124 = vlaneseq
    %v125 = vshrl.u32 %v124, 7
    %v126 = vsub.s32 7, %v125
    %v127 = vrot.slane %v47, %v126
    %v128 = vmul.f32 %v122, %v127
    %v129 = vadd.f32 %v119, %v128
    %130 = vset.pattern.permute.xlu0 8
    %131 = vperm.xlu0 %130, %v49
    %v132 = vpop.permute.xlu0 %131
    %v134 = vlaneseq
    %v135 = vshrl.u32 %v134, 7
    %v136 = vsub.s32 0, %v135
    %v137 = vrot.slane %v48, %v136
    %v138 = vmul.f32 %v132, %v137
    %v139 = vadd.f32 %v129, %v138
    %140 = vset.pattern.permute.xlu0 9
    %141 = vperm.xlu0 %140, %v49
    %v142 = vpop.permute.xlu0 %141
    %v144 = vlaneseq
    %v145 = vshrl.u32 %v144, 7
    %v146 = vsub.s32 1, %v145
    %v147 = vrot.slane %v48, %v146
    %v148 = vmul.f32 %v142, %v147
    %v149 = vadd.f32 %v139, %v148
    %150 = vset.pattern.permute.xlu0 10
    %151 = vperm.xlu0 %150, %v49
    %v152 = vpop.permute.xlu0 %151
    %v154 = vlaneseq
    %v155 = vshrl.u32 %v154, 7
    %v156 = vsub.s32 2, %v155
    %v157 = vrot.slane %v48, %v156
    %v158 = vmul.f32 %v152, %v157
    %v159 = vadd.f32 %v149, %v158
    %160 = vset.pattern.permute.xlu0 11
    %161 = vperm.xlu0 %160, %v49
    %v162 = vpop.permute.xlu0 %161
    %v164 = vlaneseq
    %v165 = vshrl.u32 %v164, 7
    %v166 = vsub.s32 3, %v165
    %v167 = vrot.slane %v48, %v166
    %v168 = vmul.f32 %v162, %v167
    %v169 = vadd.f32 %v159, %v168
    %170 = vset.pattern.permute.xlu0 12
    %171 = vperm.xlu0 %170, %v49
    %v172 = vpop.permute.xlu0 %171
    %v174 = vlaneseq
    %v175 = vshrl.u32 %v174, 7
    %v176 = vsub.s32 4, %v175
    %v177 = vrot.slane %v48, %v176
    %v178 = vmul.f32 %v172, %v177
    %v179 = vadd.f32 %v169, %v178
    %180 = vset.pattern.permute.xlu0 13
    %181 = vperm.xlu0 %180, %v49
    %v182 = vpop.permute.xlu0 %181
    %v184 = vlaneseq
    %v185 = vshrl.u32 %v184, 7
    %v186 = vsub.s32 5, %v185
    %v187 = vrot.slane %v48, %v186
    %v188 = vmul.f32 %v182, %v187
    %v189 = vadd.f32 %v179, %v188
    %190 = vset.pattern.permute.xlu0 14
    %191 = vperm.xlu0 %190, %v49
    %v192 = vpop.permute.xlu0 %191
    %v194 = vlaneseq
    %v195 = vshrl.u32 %v194, 7
    %v196 = vsub.s32 6, %v195
    %v197 = vrot.slane %v48, %v196
    %v198 = vmul.f32 %v192, %v197
    %v199 = vadd.f32 %v189, %v198
    %200 = vset.pattern.permute.xlu0 15
    %201 = vperm.xlu0 %200, %v49
    %v202 = vpop.permute.xlu0 %201
    %v204 = vlaneseq
    %v205 = vshrl.u32 %v204, 7
    %v206 = vsub.s32 7, %v205
    %v207 = vrot.slane %v48, %v206
    %v208 = vmul.f32 %v202, %v207
    %v209 = vadd.f32 %v199, %v208
    %210 = vset.pattern.permute.xlu0 2
    %211 = vperm.xlu0 %210, %v16
    %v212 = vpop.permute.xlu0 %211
    %v214 = vadd.f32 %v209, %v212
    %v215 = vtanh.pop %v214
    %216 = vset.pattern.permute.xlu0 3
    %217 = vperm.xlu0 %216, %v16
    %v218 = vpop.permute.xlu0 %217
    %v220 = vmul.f32 %v218, %v215
    %v221 = vrot.slane %v220, 4
    %v222 = vadd.f32 %v220, %v221
    %v223 = vrot.slane %v222, 2
    %v224 = vadd.f32 %v222, %v223
    %v225 = vrot.slane %v224, 1
    %v226 = vadd.f32 %v224, %v225
    %228 = vset.pattern.permute.xlu0 4
    %229 = vperm.xlu0 %228, %v18
    %v230 = vpop.permute.xlu0 %229
    %v232 = vadd.f32 %v226, %v230
    %233 = vst [vmem:[#allocation2] sm:$0x1] %v232
    // Predicated region
    $region14: #{tpu_custom_call.1} parent=1 // pred_check
      _
    $region15: #{tpu_custom_call.1} parent=1 // pred_check_branch
      %235 = sbr.rel (0) target = $region17
    $region16: #{tpu_custom_call.1} parent=1 // pred_region
      %s237 = ssub.s32 16, 16
      %238 = vsyncadd [#allocation3], %s237
      %s240 = sshll.u32 [#allocation2], 4
      %s241 = int_to_ptr.vmem [resolvable:$true] %s240
      %243 = dma.vmem_to_hbm [thread:$0]  %s241, 16, %s3, [#allocation3]
    $region17: #{tpu_custom_call.1} parent=1 // pred_fallthru
      _
    // Predicated region
    $region18: #{tpu_custom_call.1} parent=1 // pred_check
      _
    $region19: #{tpu_custom_call.1} parent=1 // pred_check_branch
      %245 = sbr.rel (0) target = $region21
    $region20: #{tpu_custom_call.1} parent=1 // pred_region
      %246 = dma.done [#allocation3], 16
    $region21: #{tpu_custom_call.1} parent=1 // pred_fallthru
      _
    %247 = vsyncpa [#allocation3], 1

</llo_original>
